<compile_context>
chip_gen: v7x
topology: tpu7x:2x2x1
jax: 0.10.0
libtpu: 0.0.40
codegen_flags: <defaults>
</compile_context>

<pallas_src>
import functools
import math

import jax
import jax.numpy as jnp
from jax import lax
from jax.experimental import pallas as pl
from jax.experimental.pallas import tpu as pltpu


def _head_dec_kernel(x_ref, w_ref, b_ref, out_ref, *, head_size, hp):
    # x_ref:   (T, C)       activations for this batch element (f32)
    # w_ref:   (C, 3*hp)    fused + lane-padded [q*scale | k | v] weights (bf16)
    # b_ref:   (1, 3*hp)    fused + lane-padded biases (f32, q bias pre-scaled)
    # out_ref: (1, T, head_size)
    T = x_ref.shape[0]

    # One fused projection matmul (bf16 operands, f32 accumulate).
    x_bf = x_ref[...].astype(jnp.bfloat16)
    qkv = jnp.dot(x_bf, w_ref[...],
                  preferred_element_type=jnp.float32) + b_ref[...]
    q = qkv[:, 0 * hp:1 * hp]      # (T, hp), lane-aligned slices; q pre-scaled
    k = qkv[:, 1 * hp:2 * hp]
    v = qkv[:, 2 * hp:3 * hp]

    # scores = (q * scale) @ k^T without materializing k^T: contract the last
    # dim of both operands.  Scale already folded into the q weights.
    scores = lax.dot_general(
        q.astype(jnp.bfloat16), k.astype(jnp.bfloat16),
        dimension_numbers=(((1,), (1,)), ((), ())),
        preferred_element_type=jnp.float32)

    # Causal mask.  finfo.min fill: (scores - m) may round to -inf for masked
    # entries, but exp(-inf) == 0, so the result is exact (benign).
    row = lax.broadcasted_iota(jnp.int32, (T, T), 0)
    col = lax.broadcasted_iota(jnp.int32, (T, T), 1)
    neg = jnp.finfo(jnp.float32).min
    scores = jnp.where(col <= row, scores, neg)

    # Numerically-stable softmax; normalization deferred past the value
    # matmul so we never touch the (T,T) tile with a VPU multiply.
    m = jnp.max(scores, axis=-1, keepdims=True)
    e = jnp.exp(scores - m)                       # (T, T) f32
    denom = jnp.sum(e, axis=-1, keepdims=True)    # (T, 1), >= 1 on the diag

    # dropout: identity in eval mode.
    ov = jnp.dot(e.astype(jnp.bfloat16), v.astype(jnp.bfloat16),
                 preferred_element_type=jnp.float32)          # (T, hp)
    inv = pl.reciprocal(denom, approx=False)                  # exact, (T,1)
    out_ref[0] = (ov[:, :head_size] * inv).astype(out_ref.dtype)


def prepare_head_dec_params(wk, bk, wq, bq, wv, bv):
    """One-time parameter prep (do NOT re-run per forward call).

    Fuses q|k|v into one lane-padded weight/bias slab, folds the
    head_size**-0.5 scale into the q weights/bias, and casts the weights to
    bf16 for the MXU.
    """
    C, H = wq.shape
    HP = ((H + 127) // 128) * 128          # lane-dense padded head width
    scale = H ** -0.5                      # power of two for H=16 -> exact

    def pad_w(w):
        return jnp.pad(w, ((0, 0), (0, HP - H)))

    def pad_b(b):
        return jnp.pad(b.reshape(1, H), ((0, 0), (0, HP - H)))

    w_qkv = jnp.concatenate(
        [pad_w(wq * scale), pad_w(wk), pad_w(wv)], axis=1).astype(jnp.bfloat16)
    b_qkv = jnp.concatenate(
        [pad_b(bq * scale), pad_b(bk), pad_b(bv)], axis=1)     # keep f32
    return {"w_qkv": w_qkv, "b_qkv": b_qkv, "head_size": H, "hp": HP}


def head_dec(x, params):
    """x: (B, T, C) f32; params from prepare_head_dec_params. Returns (B, T, H)."""
    B, T, C = x.shape
    H = params["head_size"]
    HP = params["hp"]
    # Sublane constraint for the (T, C) input block.
    # TODO(synk): pad T to a multiple of 8 for general sequence lengths.
    assert T % 8 == 0, "T must be a multiple of 8 (sublane) for this kernel"

    x2 = x.reshape(B * T, C)               # fold batch into the matmul M dim
    kernel = functools.partial(_head_dec_kernel, head_size=H, hp=HP)

    # NOTE: w_qkv / b_qkv have constant index_maps; once C grows, single-buffer
    # them (pipeline_mode=pl.Buffered(1)) to halve their VMEM footprint.
    # NOTE: on v7x the "parallel" batch axis is megacore-sharded; at tiny B*T
    # each core gets an M=T matmul — benchmark before relying on the split.
    return pl.pallas_call(
        kernel,
        out_shape=jax.ShapeDtypeStruct((B, T, H), x.dtype),
        grid_spec=pltpu.PrefetchScalarGridSpec(
            num_scalar_prefetch=0,
            grid=(B,),
            in_specs=[
                pl.BlockSpec((T, C), lambda b: (b, 0)),
                pl.BlockSpec((C, 3 * HP), lambda b: (0, 0)),
                pl.BlockSpec((1, 3 * HP), lambda b: (0, 0)),
            ],
            out_specs=pl.BlockSpec((1, T, H), lambda b: (b, 0, 0)),
        ),
        compiler_params=pltpu.CompilerParams(
            dimension_semantics=("parallel",)),
    )(x2, params["w_qkv"], params["b_qkv"])


def reference(x, wk, bk, wq, bq, wv, bv):
    """Pure-JAX f32 reference matching the PyTorch forward (eval mode)."""
    k = x @ wk + bk
    q = x @ wq + bq
    v = x @ wv + bv
    H = k.shape[-1]
    W = (q @ jnp.swapaxes(k, -1, -2)) * (H ** -0.5)
    T = x.shape[1]
    tril = jnp.tril(jnp.ones((T, T), dtype=bool))
    W = jnp.where(tril, W, -jnp.inf)
    W = jax.nn.softmax(W, axis=-1)
    return W @ v


if __name__ == "__main__":
    # Shapes consistent with the module:
    #   n_embed = C = 32, head_size = H = 16, block_size = T = 8, batch B = 2
    B, T, C, H = 2, 8, 32, 16

    key = jax.random.PRNGKey(0)
    kx, k1, k2, k3, k4, k5, k6 = jax.random.split(key, 7)

    x = jax.random.normal(kx, (B, T, C), dtype=jnp.float32)

    # Deterministic parameter init (uniform, roughly like nn.Linear default).
    bound = 1.0 / math.sqrt(C)
    wk = jax.random.uniform(k1, (C, H), jnp.float32, -bound, bound)
    bk = jax.random.uniform(k2, (1, H), jnp.float32, -bound, bound)
    wq = jax.random.uniform(k3, (C, H), jnp.float32, -bound, bound)
    bq = jax.random.uniform(k4, (1, H), jnp.float32, -bound, bound)
    wv = jax.random.uniform(k5, (C, H), jnp.float32, -bound, bound)
    bv = jax.random.uniform(k6, (1, H), jnp.float32, -bound, bound)

    params = prepare_head_dec_params(wk, bk, wq, bq, wv, bv)  # one-time prep
    out = head_dec(x, params)
    out = jax.block_until_ready(out)

    ref = reference(x, wk, bk, wq, bq, wv, bv)
    assert out.shape == (B, T, H), out.shape
    # Tolerance reflects bf16 MXU operands (f32 accumulate, exact softmax
    # reciprocal); the f32 reference is exact.
    assert jnp.allclose(out, ref, atol=2e-2, rtol=2e-2), \
        f"max err {jnp.max(jnp.abs(out - ref))}"

    print("KERNEL_OK")
</pallas_src>

<mosaic_0001>
module attributes {stable_mosaic.version = 11 : i64} {
  func.func @_head_dec_kernel(%arg0: i32, %arg1: memref<8x32xf32, #tpu.memory_space<vmem>>, %arg2: memref<32x384xbf16, #tpu.memory_space<vmem>>, %arg3: memref<1x384xf32, #tpu.memory_space<vmem>>, %arg4: memref<1x8x16xf32, #tpu.memory_space<vmem>>) attributes {dimension_semantics = [#tpu.dimension_semantics<parallel>], iteration_bounds = array<i64: 2>, scalar_prefetch = 0 : i64, scratch_operands = 0 : i64, tpu.core_type = #tpu.core_type<tc>, window_params = [{transform_indices = @transform_0, window_bounds = array<i64: 8, 32>}, {pipeline_mode = #tpu.pipeline_mode<synchronous>, transform_indices = @transform_1, window_bounds = array<i64: 32, 384>}, {pipeline_mode = #tpu.pipeline_mode<synchronous>, transform_indices = @transform_2, window_bounds = array<i64: 1, 384>}, {transform_indices = @transform_3, window_bounds = array<i64: 1, 8, 16>}]} {
    %c0 = arith.constant 0 : index
    %c0_0 = arith.constant 0 : index
    %0 = vector.load %arg1[%c0, %c0_0] : memref<8x32xf32, #tpu.memory_space<vmem>>, vector<8x32xf32>
    %1 = arith.truncf %0 : vector<8x32xf32> to vector<8x32xbf16>
    %c0_1 = arith.constant 0 : index
    %c0_2 = arith.constant 0 : index
    %2 = vector.load %arg2[%c0_1, %c0_2] : memref<32x384xbf16, #tpu.memory_space<vmem>>, vector<32x384xbf16>
    %cst = arith.constant dense<0.000000e+00> : vector<8x384xf32>
    %3 = tpu.matmul %1, %2, %cst {dimension_numbers = #tpu.dot_dimension_numbers<[1], [0], [0], [1], [0, 0, 1, 1], [], []>} : vector<8x32xbf16>, vector<32x384xbf16>, vector<8x384xf32> -> vector<8x384xf32>
    %c0_3 = arith.constant 0 : index
    %c0_4 = arith.constant 0 : index
    %4 = vector.load %arg3[%c0_3, %c0_4] : memref<1x384xf32, #tpu.memory_space<vmem>>, vector<1x384xf32>
    %5 = vector.broadcast %4 : vector<1x384xf32> to vector<8x384xf32>
    %6 = arith.addf %3, %5 : vector<8x384xf32>
    %7 = vector.extract_strided_slice %6 {offsets = [0, 0], sizes = [8, 128], strides = [1, 1]} : vector<8x384xf32> to vector<8x128xf32>
    %8 = vector.extract_strided_slice %6 {offsets = [0, 128], sizes = [8, 128], strides = [1, 1]} : vector<8x384xf32> to vector<8x128xf32>
    %9 = vector.extract_strided_slice %6 {offsets = [0, 256], sizes = [8, 128], strides = [1, 1]} : vector<8x384xf32> to vector<8x128xf32>
    %10 = arith.truncf %7 : vector<8x128xf32> to vector<8x128xbf16>
    %11 = arith.truncf %8 : vector<8x128xf32> to vector<8x128xbf16>
    %cst_5 = arith.constant dense<0.000000e+00> : vector<8x8xf32>
    %12 = tpu.matmul %10, %11, %cst_5 {dimension_numbers = #tpu.dot_dimension_numbers<[1], [1], [0], [0], [0, 0, 1, 0], [], []>} : vector<8x128xbf16>, vector<8x128xbf16>, vector<8x8xf32> -> vector<8x8xf32>
    %13 = tpu.iota {dimensions = array<i32: 0>} : vector<8x8xi32>
    %14 = tpu.iota {dimensions = array<i32: 1>} : vector<8x8xi32>
    %15 = arith.cmpi sle, %14, %13 : vector<8x8xi32>
    %cst_6 = arith.constant -3.40282347E+38 : f32
    %16 = vector.broadcast %cst_6 : f32 to vector<8x8xf32>
    %17 = arith.select %15, %12, %16 : vector<8x8xi1>, vector<8x8xf32>
    %cst_7 = arith.constant dense<0xFF800000> : vector<8xf32>
    %18 = vector.multi_reduction <maximumf>, %17, %cst_7 [1] : vector<8x8xf32> to vector<8xf32>
    %19 = vector.shape_cast %18 : vector<8xf32> to vector<8x1xf32>
    %20 = vector.broadcast %19 : vector<8x1xf32> to vector<8x8xf32>
    %21 = arith.subf %17, %20 : vector<8x8xf32>
    %22 = math.exp %21 : vector<8x8xf32>
    %cst_8 = arith.constant dense<0.000000e+00> : vector<8xf32>
    %23 = vector.multi_reduction <add>, %22, %cst_8 [1] : vector<8x8xf32> to vector<8xf32>
    %24 = vector.shape_cast %23 : vector<8xf32> to vector<8x1xf32>
    %25 = arith.truncf %22 : vector<8x8xf32> to vector<8x8xbf16>
    %26 = arith.truncf %9 : vector<8x128xf32> to vector<8x128xbf16>
    %cst_9 = arith.constant dense<0.000000e+00> : vector<8x128xf32>
    %27 = tpu.matmul %25, %26, %cst_9 {dimension_numbers = #tpu.dot_dimension_numbers<[1], [0], [0], [1], [0, 0, 1, 1], [], []>} : vector<8x8xbf16>, vector<8x128xbf16>, vector<8x128xf32> -> vector<8x128xf32>
    %28 = tpu.reciprocal %24 : vector<8x1xf32> -> vector<8x1xf32>
    %29 = vector.extract_strided_slice %27 {offsets = [0, 0], sizes = [8, 16], strides = [1, 1]} : vector<8x128xf32> to vector<8x16xf32>
    %30 = vector.broadcast %28 : vector<8x1xf32> to vector<8x16xf32>
    %31 = arith.mulf %29, %30 : vector<8x16xf32>
    %c0_10 = arith.constant 0 : index
    %c0_11 = arith.constant 0 : index
    %c0_12 = arith.constant 0 : index
    %32 = vector.load %arg4[%c0_10, %c0_11, %c0_12] : memref<1x8x16xf32, #tpu.memory_space<vmem>>, vector<1x8x16xf32>
    %33 = vector.shape_cast %32 : vector<1x8x16xf32> to vector<8x16xf32>
    %34 = vector.shape_cast %31 : vector<8x16xf32> to vector<1x8x16xf32>
    tpu.vector_store %arg4[%c0_10, %c0_11, %c0_12], %34 {strides = array<i32>} : memref<1x8x16xf32, #tpu.memory_space<vmem>>, vector<1x8x16xf32>,
    return
  }
  func.func @transform_0(%arg0: i32) -> (i32, i32) {
    %c0_i32 = arith.constant 0 : i32
    %c0_i32_0 = arith.constant 0 : i32
    return %arg0, %c0_i32 : i32, i32
  }
  func.func @transform_1(%arg0: i32) -> (i32, i32) {
    %c0_i32 = arith.constant 0 : i32
    %c0_i32_0 = arith.constant 0 : i32
    %c0_i32_1 = arith.constant 0 : i32
    return %c0_i32, %c0_i32_0 : i32, i32
  }
  func.func @transform_2(%arg0: i32) -> (i32, i32) {
    %c0_i32 = arith.constant 0 : i32
    %c0_i32_0 = arith.constant 0 : i32
    %c0_i32_1 = arith.constant 0 : i32
    return %c0_i32, %c0_i32_0 : i32, i32
  }
  func.func @transform_3(%arg0: i32) -> (i32, i32, i32) {
    %c0_i32 = arith.constant 0 : i32
    %c0_i32_0 = arith.constant 0 : i32
    %c0_i32_1 = arith.constant 0 : i32
    return %arg0, %c0_i32, %c0_i32_0 : i32, i32, i32
  }
}

</mosaic_0001>

<llo_original>
// kernel: tpu_custom_call.1
$region0: #{tpu_custom_call.1}
  #allocation0 [shape = 'u32[]', space=smem, size = 0x4, offset = 0x4, fixed_abs, tag = 'smem constant byte address 0x4 - core index']
  #allocation1 [shape = 'u32[144,128]{1,0:T(1,128)}', space=vmem, size = 0x12000, scoped, tag = 'internal scratch']
  %s0 = inlined_call_operand.hbm [shape: f32[16,32], index: 0, kind: input, shape index: {}]
  %s1 = inlined_call_operand.hbm [shape: bf16[32,384], index: 1, kind: input, shape index: {}]
  %s2 = inlined_call_operand.vmem [shape: f32[1,384], index: 2, kind: input, shape index: {}]
  %s3 = inlined_call_operand.hbm [shape: f32[2,8,16], index: 3, kind: output, shape index: {}]
  %s4 = sld [smem:[#allocation0]]
  $region53: #{tpu_custom_call.1} parent=0
    _
  %s6 = ssub.s32 1, %s4
  %s7 = scalar_select 0, %s6, %s4
  $region1: #{tpu_custom_call.1} parent=0
    #allocation2 [shape = 'u8[8192]{0}', space=vmem, size = 0x2000, scoped, tag = 'input window, operand 0']
    #allocation3 [shape = 's32[2]{0}', space=sflag, size = 0x8, scoped, tag = 'scoped memory for tpu_custom_call.1']
    #allocation4 [shape = 's32[2]{0}', space=sflag, size = 0x8, scoped, tag = 'scoped memory for tpu_custom_call.1']
    #allocation5 [shape = 'u8[24576]{0}', space=vmem, size = 0x6000, scoped, tag = 'input window, operand 1, single buffered']
    #allocation6 [shape = 's32[1]{0}', space=sflag, size = 0x4, scoped, tag = 'scoped memory for tpu_custom_call.1']
    #allocation7 [shape = 'u8[8192]{0}', space=vmem, size = 0x2000, scoped, tag = 'output window, operand 0']
    %8 = vsyncpa [#allocation3], 0
    %s9 = scalar_lea.sflag [#allocation3], 1
    %10 = vsyncpa %s9, 0
    %11 = vsyncpa [#allocation6], 0
    %12 = vsyncpa [#allocation4], 0
    %s13 = scalar_lea.sflag [#allocation4], 1
    %14 = vsyncpa %s13, 0
    loop: start=0, step=1, limit=4
    $region2: #{tpu_custom_call.1} parent=1 // loop_pre_header
      _
    $region3: #{tpu_custom_call.1} parent=1 // loop_header
      %s16 = sphi 0, %s20
      %p17 = scmp.ge.s32.totalorder %s16, 4
      %s26 = sphi 0, %s28
      %s29 = sphi 0, %s26
      %s30 = sphi 0, %s29
      %s46 = sphi 0, %s30
      %s50 = sphi 0, %s50
      %s52 = sphi 0, %s50
      %s53 = sphi 0, %s52
      %s67 = sphi 0, %s53
      %s71 = sphi 0, %s71
      %s73 = sphi 0, %s71
      %s74 = sphi 0, %s73
      %s88 = sphi 0, %s74
      %s94 = sphi 0, %s96
      %s97 = sphi 0, %s94
      %s98 = sphi 0, %s97
      %s114 = sphi 0, %s98
    $region4: #{tpu_custom_call.1} parent=1 // loop_header_branch
      %19 = sbr.rel (%p17) target = $region8
    $region5: #{tpu_custom_call.1} parent=1 // loop_body
      %s21 = ssub.s32 %s16, 1
      %s22 = ssub.s32 %s16, 2
      %s23 = sadd.s32 %s16, 1
      %s24 = ssub.s32 %s16, %s23
      %p25 = scmp.eq.s32.totalorder %s24, 0
      %s27 = sadd.s32 %s26, 1
      %s28 = scalar_select %p25, %s26, %s27
      %p31 = pneg %p25
      %p32 = scmp.eq.s32.totalorder %s16, 1
      %p33 = por %p31, %p32
      %p34 = scmp.ne.s32.totalorder %s26, %s29
      %p35 = scmp.eq.s32.totalorder %s16, 0
      %p36 = por %p34, %p35
      %p37 = scmp.ne.s32.totalorder %s26, %s29
      %p38 = scmp.eq.s32.totalorder %s21, 1
      %p39 = por %p37, %p38
      %p40 = scmp.ne.s32.totalorder %s29, %s30
      %p41 = scmp.eq.s32.totalorder %s21, 0
      %p42 = por %p40, %p41
      %p43 = scmp.ne.s32.totalorder %s29, %s30
      %p44 = scmp.eq.s32.totalorder %s22, 1
      %p45 = por %p43, %p44
      %p47 = scmp.ne.s32.totalorder %s30, %s46
      %p48 = scmp.eq.s32.totalorder %s22, 0
      %p49 = por %p47, %p48
      %s51 = sadd.s32 %s50, 1
      %p54 = scmp.eq.s32.totalorder %s16, 1
      %p55 = scmp.ne.s32.totalorder %s50, %s52
      %p56 = scmp.eq.s32.totalorder %s16, 0
      %p57 = por %p55, %p56
      %p58 = scmp.ne.s32.totalorder %s50, %s52
      %p59 = scmp.eq.s32.totalorder %s21, 1
      %p60 = por %p58, %p59
      %p61 = scmp.ne.s32.totalorder %s52, %s53
      %p62 = scmp.eq.s32.totalorder %s21, 0
      %p63 = por %p61, %p62
      %p64 = scmp.ne.s32.totalorder %s52, %s53
      %p65 = scmp.eq.s32.totalorder %s22, 1
      %p66 = por %p64, %p65
      %p68 = scmp.ne.s32.totalorder %s53, %s67
      %p69 = scmp.eq.s32.totalorder %s22, 0
      %p70 = por %p68, %p69
      %s72 = sadd.s32 %s71, 1
      %p75 = scmp.eq.s32.totalorder %s16, 1
      %p76 = scmp.ne.s32.totalorder %s71, %s73
      %p77 = scmp.eq.s32.totalorder %s16, 0
      %p78 = por %p76, %p77
      %p79 = scmp.ne.s32.totalorder %s71, %s73
      %p80 = scmp.eq.s32.totalorder %s21, 1
      %p81 = por %p79, %p80
      %p82 = scmp.ne.s32.totalorder %s73, %s74
      %p83 = scmp.eq.s32.totalorder %s21, 0
      %p84 = por %p82, %p83
      %p85 = scmp.ne.s32.totalorder %s73, %s74
      %p86 = scmp.eq.s32.totalorder %s22, 1
      %p87 = por %p85, %p86
      %p89 = scmp.ne.s32.totalorder %s74, %s88
      %p90 = scmp.eq.s32.totalorder %s22, 0
      %p91 = por %p89, %p90
      %s92 = ssub.s32 %s16, %s23
      %p93 = scmp.eq.s32.totalorder %s92, 0
      %s95 = sadd.s32 %s94, 1
      %s96 = scalar_select %p93, %s94, %s95
      %p99 = pneg %p93
      %p100 = scmp.eq.s32.totalorder %s16, 1
      %p101 = por %p99, %p100
      %p102 = scmp.ne.s32.totalorder %s94, %s97
      %p103 = scmp.eq.s32.totalorder %s16, 0
      %p104 = por %p102, %p103
      %p105 = scmp.ne.s32.totalorder %s94, %s97
      %p106 = scmp.eq.s32.totalorder %s21, 1
      %p107 = por %p105, %p106
      %p108 = scmp.ne.s32.totalorder %s97, %s98
      %p109 = scmp.eq.s32.totalorder %s21, 0
      %p110 = por %p108, %p109
      %p111 = scmp.ne.s32.totalorder %s97, %s98
      %p112 = scmp.eq.s32.totalorder %s22, 1
      %p113 = por %p111, %p112
      %p115 = scmp.ne.s32.totalorder %s98, %s114
      %p116 = scmp.eq.s32.totalorder %s22, 0
      %p117 = por %p115, %p116
      %p118 = scmp.le.s32.totalorder 1, %s16
      %p119 = scmp.lt.s32.totalorder %s16, 3
      %p120 = pnand %p118, %p119
      %p121 = pneg %p120
      // Predicated region
      $region9: #{tpu_custom_call.1} parent=5 // pred_check
        _
      $region10: #{tpu_custom_call.1} parent=5 // pred_check_branch
        %123 = sbr.rel (%p120) target = $region12
      $region11: #{tpu_custom_call.1} parent=5 // pred_region
        %s124 = ssub.s32 %s16, 1
        // Predicated region
        $region13: #{tpu_custom_call.1} parent=11 // pred_check
          %p125 = pneg %p63
        $region14: #{tpu_custom_call.1} parent=11 // pred_check_branch
          %127 = sbr.rel (%p125) target = $region16
        $region15: #{tpu_custom_call.1} parent=11 // pred_region
          %s129 = ssub.s32 768, 768
          %130 = vsyncadd [#allocation6], %s129
          %s131 = sshll.u32 [#allocation5], 4
          %s132 = int_to_ptr.vmem [resolvable:$true] %s131
          %137 = dma.hbm_to_vmem [thread:$0]  %s1, 768, %s132, [#allocation6], 192, 192, 12
        $region16: #{tpu_custom_call.1} parent=11 // pred_fallthru
          _
        // Predicated region
        $region17: #{tpu_custom_call.1} parent=11 // pred_check
          %p138 = pneg %p84
        $region18: #{tpu_custom_call.1} parent=11 // pred_check_branch
          %140 = sbr.rel (%p138) target = $region20
        $region19: #{tpu_custom_call.1} parent=11 // pred_region
          _
        $region20: #{tpu_custom_call.1} parent=11 // pred_fallthru
          _
      $region12: #{tpu_custom_call.1} parent=5 // pred_fallthru
        _
      %p141 = scmp.lt.s32.totalorder %s16, 2
      // Predicated region
      $region21: #{tpu_custom_call.1} parent=5 // pred_check
        %p142 = pneg %p141
      $region22: #{tpu_custom_call.1} parent=5 // pred_check_branch
        %144 = sbr.rel (%p142) target = $region24
      $region23: #{tpu_custom_call.1} parent=5 // pred_region
        // Predicated region
        $region25: #{tpu_custom_call.1} parent=23 // pred_check
          %p145 = pneg %p36
        $region26: #{tpu_custom_call.1} parent=23 // pred_check_branch
          %147 = sbr.rel (%p145) target = $region28
        $region27: #{tpu_custom_call.1} parent=23 // pred_region
          %s148 = sand.u32 %s26, 1
          %s149 = scalar_lea.sflag [#allocation3], %s148
          %s150 = sand.u32 %s26, 1
          %s151 = smul.addr %s150, 8
          %s152 = scalar_lea.vmem [#allocation2], %s151
          %s154 = ssub.s32 128, 128
          %155 = vsyncadd %s149, %s154
          %s156 = smul.addr %s16, 128
          %s157 = scalar_lea.hbm %s0, %s156
          %s159 = sshll.u32 %s152, 4
          %s160 = int_to_ptr.vmem [resolvable:$true] %s159
          %162 = dma.hbm_to_vmem [thread:$0]  %s157, 128, %s160, %s149
        $region28: #{tpu_custom_call.1} parent=23 // pred_fallthru
          _
      $region24: #{tpu_custom_call.1} parent=5 // pred_fallthru
        _
      %p163 = scmp.le.s32.totalorder 1, %s16
      %p164 = scmp.lt.s32.totalorder %s16, 3
      %p165 = pnand %p163, %p164
      %p166 = pneg %p165
      // Predicated region
      $region29: #{tpu_custom_call.1} parent=5 // pred_check
        _
      $region30: #{tpu_custom_call.1} parent=5 // pred_check_branch
        %168 = sbr.rel (%p165) target = $region32
      $region31: #{tpu_custom_call.1} parent=5 // pred_region
        %s169 = ssub.s32 %s16, 1
        %s170 = sand.u32 %s29, 1
        %s171 = scalar_lea.sflag [#allocation3], %s170
        %s172 = sand.u32 %s29, 1
        %s173 = smul.addr %s172, 8
        %s174 = scalar_lea.vmem [#allocation2], %s173
        // Predicated region
        $region33: #{tpu_custom_call.1} parent=31 // pred_check
          %p175 = pneg %p42
        $region34: #{tpu_custom_call.1} parent=31 // pred_check_branch
          %177 = sbr.rel (%p175) target = $region36
        $region35: #{tpu_custom_call.1} parent=31 // pred_region
          %178 = dma.done %s171, 128
        $region36: #{tpu_custom_call.1} parent=31 // pred_fallthru
          _
        // Predicated region
        $region37: #{tpu_custom_call.1} parent=31 // pred_check
          %p179 = pneg %p63
        $region38: #{tpu_custom_call.1} parent=31 // pred_check_branch
          %181 = sbr.rel (%p179) target = $region40
        $region39: #{tpu_custom_call.1} parent=31 // pred_region
          %182 = dma.done [#allocation6], 768
        $region40: #{tpu_custom_call.1} parent=31 // pred_fallthru
          _
        %s183 = sand.u32 %s29, 1
        %s184 = scalar_lea.sflag [#allocation3], %s183
        %s185 = sand.u32 %s29, 1
        %s186 = smul.addr %s185, 8
        %s187 = scalar_lea.vmem [#allocation2], %s186
        %p188 = pneg %p42
        %p189 = pneg %p39
        %p190 = pneg %p63
        %p191 = pneg %p60
        %p192 = pneg %p84
        %p193 = pneg %p81
        %p194 = pneg %p110
        %p195 = pneg %p107
        %s196 = sand.u32 %s97, 1
        %s197 = scalar_lea.sflag [#allocation4], %s196
        %s198 = sand.u32 %s97, 1
        %s199 = smul.addr %s198, 8
        %s200 = scalar_lea.vmem [#allocation7], %s199
        %v202 = vld [vmem:[%s174] sm:$0xff]
        %v203 = vpack.c.bf16 %v202, %v202
        %v204 = vld [vmem:[#allocation5] sm:$0xff]
        %v205 = vld [vmem:[#allocation5 + $0x8] sm:$0xf]
        %v206 = vld [vmem:[#allocation5 + $0xc] sm:$0xff]
        %v207 = vld [vmem:[#allocation5 + $0x14] sm:$0xf]
        %v208 = vld [vmem:[#allocation5 + $0x18] sm:$0xff]
        %v209 = vld [vmem:[#allocation5 + $0x20] sm:$0xf]
        %v210 = vld [vmem:[#allocation5 + $0x24] sm:$0xff]
        %v211 = vld [vmem:[#allocation5 + $0x2c] sm:$0xf]
        %v212 = vld [vmem:[%s2] sm:$0x7]
        %v214 = vlaneseq
        %v215 = vshrl.u32 %v214, 7
        %v216 = vsub.s32 0, %v215
        %v217 = vrot.slane %v212, %v216
        %v218 = vlaneseq
        %v219 = vshrl.u32 %v218, 7
        %v220 = vsub.s32 1, %v219
        %v221 = vrot.slane %v212, %v220
        %v222 = vlaneseq
        %v223 = vshrl.u32 %v222, 7
        %v224 = vsub.s32 2, %v223
        %v225 = vrot.slane %v212, %v224
        %v237 = vunpack.c.l.b16 %v204
        %v238 = vunpack.c.h.b16 %v204
        %v239 = vunpack.c.l.b16 %v205
        %v240 = vunpack.c.l.b16 %v206
        %v241 = vunpack.c.h.b16 %v206
        %v242 = vunpack.c.l.b16 %v207
        %v243 = vunpack.c.l.b16 %v208
        %v244 = vunpack.c.h.b16 %v208
        %v245 = vunpack.c.l.b16 %v209
        %v246 = vunpack.c.l.b16 %v210
        %v247 = vunpack.c.h.b16 %v210
        %v248 = vunpack.c.l.b16 %v211
        %v249 = vpack.c.b16 %v240, %v237
        %v250 = vpack.c.b16 %v241, %v238
        %v251 = vpack.c.b16 %v242, %v239
        %v252 = vpack.c.b16 %v246, %v243
        %v253 = vpack.c.b16 %v247, %v244
        %v254 = vpack.c.b16 %v248, %v245
        %vm261 = vcmask 261120
        %v263 = vsel %vm261, %v203, 0
        %265 = vmatprep.subr.bf16.mxu0 %v250
        %266 = vmatpush1.bf16.msra.mxu0 %v249
        %267 = vmatprep.subr.bf16.mxu0 %v253
        %268 = vmatpush1.bf16.msra.mxu0 %v252
        %269 = vmatprep.subr.bf16.mxu0 0
        %270 = vmatpush1.bf16.msra.mxu0 0
        %271 = vmatprep.subr.bf16.mxu0 0
        %272 = vmatpush1.bf16.msra.mxu0 0
        %273 = vmatprep.subr.bf16.mxu0 0
        %274 = vmatpush1.bf16.msra.mxu0 0
        %275 = vmatprep.subr.bf16.mxu0 0
        %276 = vmatpush1.bf16.msra.mxu0 0
        %277 = vmatprep.subr.bf16.mxu0 0
        %278 = vmatpush1.bf16.msra.mxu0 0
        %279 = vmatprep.subr.bf16.mxu0 0
        %280 = vmatpush1.bf16.msra.mxu0 0
        %281 = vmatprep.subr.bf16.mxu0 0
        %282 = vmatpush1.bf16.msra.mxu0 0
        %283 = vmatprep.subr.bf16.mxu0 0
        %284 = vmatpush1.bf16.msra.mxu0 0
        %285 = vmatprep.subr.bf16.mxu0 0
        %286 = vmatpush1.bf16.msra.mxu0 0
        %287 = vmatprep.subr.bf16.mxu0 0
        %288 = vmatpush1.bf16.msra.mxu0 0
        %289 = vmatprep.subr.bf16.mxu0 0
        %290 = vmatpush1.bf16.msra.mxu0 0
        %291 = vmatprep.subr.bf16.mxu0 0
        %292 = vmatpush1.bf16.msra.mxu0 0
        %293 = vmatprep.subr.bf16.mxu0 0
        %294 = vmatpush1.bf16.msra.mxu0 0
        %295 = vmatprep.subr.bf16.mxu0 0
        %296 = vmatpush1.bf16.msra.mxu0 0
        %297 = vmatprep.mubr.bf16.mxu0 0
        %298 = vmatmul.mubr.bf16.gmra.mrb[0].mxu0 %v263
        %v299 = vpop.f32.mrb[0].mxu0
        %v300 = vadd.f32 %v217, %v299
        %v301 = vpop.f32.mrb[0].mxu0
        %v302 = vadd.f32 %v221, %v301
        %v303 = vpop.f32.mrb[0].mxu0
        %v304 = vpop.f32.mrb[0].mxu0
        %305 = vdwg.mxu0
        %306 = vmatprep.subr.bf16.mxu0 0
        %307 = vmatpush1.bf16.msra.mxu0 %v251
        %308 = vmatprep.subr.bf16.mxu0 0
        %309 = vmatpush1.bf16.msra.mxu0 %v254
        %310 = vmatprep.subr.bf16.mxu0 0
        %311 = vmatpush1.bf16.msra.mxu0 0
        %312 = vmatprep.subr.bf16.mxu0 0
        %313 = vmatpush1.bf16.msra.mxu0 0
        %314 = vmatprep.subr.bf16.mxu0 0
        %315 = vmatpush1.bf16.msra.mxu0 0
        %316 = vmatprep.subr.bf16.mxu0 0
        %317 = vmatpush1.bf16.msra.mxu0 0
        %318 = vmatprep.subr.bf16.mxu0 0
        %319 = vmatpush1.bf16.msra.mxu0 0
        %320 = vmatprep.subr.bf16.mxu0 0
        %321 = vmatpush1.bf16.msra.mxu0 0
        %322 = vmatprep.subr.bf16.mxu0 0
        %323 = vmatpush1.bf16.msra.mxu0 0
        %324 = vmatprep.subr.bf16.mxu0 0
        %325 = vmatpush1.bf16.msra.mxu0 0
        %326 = vmatprep.subr.bf16.mxu0 0
        %327 = vmatpush1.bf16.msra.mxu0 0
        %328 = vmatprep.subr.bf16.mxu0 0
        %329 = vmatpush1.bf16.msra.mxu0 0
        %330 = vmatprep.subr.bf16.mxu0 0
        %331 = vmatpush1.bf16.msra.mxu0 0
        %332 = vmatprep.subr.bf16.mxu0 0
        %333 = vmatpush1.bf16.msra.mxu0 0
        %334 = vmatprep.subr.bf16.mxu0 0
        %335 = vmatpush1.bf16.msra.mxu0 0
        %336 = vmatprep.subr.bf16.mxu0 0
        %337 = vmatpush1.bf16.msra.mxu0 0
        %338 = vmatprep.mubr.bf16.mxu0 0
        %339 = vmatmul.mubr.bf16.gmra.mrb[0].mxu0 %v263
        %v340 = vpop.f32.mrb[0].mxu0
        %v341 = vadd.f32 %v225, %v340
        %v342 = vpop.f32.mrb[0].mxu0
        %v343 = vpop.f32.mrb[0].mxu0
        %v344 = vpop.f32.mrb[0].mxu0
        %345 = vdwg.mxu0
        %v346 = vpack.c.bf16 %v300, %v300
        %v347 = vpack.c.bf16 %v302, %v302
        %348 = vmatprep.subr.bf16.mxu0 0
        %349 = vmatpush1.bf16.xpose.msra.mxu0 %v347
        %350 = vmatprep.subr.bf16.mxu0 0
        %351 = vmatpush1.bf16.xpose.msra.mxu0 0
        %352 = vmatprep.subr.bf16.mxu0 0
        %353 = vmatpush1.bf16.xpose.msra.mxu0 0
        %354 = vmatprep.subr.bf16.mxu0 0
        %355 = vmatpush1.bf16.xpose.msra.mxu0 0
        %356 = vmatprep.subr.bf16.mxu0 0
        %357 = vmatpush1.bf16.xpose.msra.mxu0 0
        %358 = vmatprep.subr.bf16.mxu0 0
        %359 = vmatpush1.bf16.xpose.msra.mxu0 0
        %360 = vmatprep.subr.bf16.mxu0 0
        %361 = vmatpush1.bf16.xpose.msra.mxu0 0
        %362 = vmatprep.subr.bf16.mxu0 0
        %363 = vmatpush1.bf16.xpose.msra.mxu0 0
        %364 = vmatprep.subr.bf16.mxu0 0
        %365 = vmatpush1.bf16.xpose.msra.mxu0 0
        %366 = vmatprep.subr.bf16.mxu0 0
        %367 = vmatpush1.bf16.xpose.msra.mxu0 0
        %368 = vmatprep.subr.bf16.mxu0 0
        %369 = vmatpush1.bf16.xpose.msra.mxu0 0
        %370 = vmatprep.subr.bf16.mxu0 0
        %371 = vmatpush1.bf16.xpose.msra.mxu0 0
        %372 = vmatprep.subr.bf16.mxu0 0
        %373 = vmatpush1.bf16.xpose.msra.mxu0 0
        %374 = vmatprep.subr.bf16.mxu0 0
        %375 = vmatpush1.bf16.xpose.msra.mxu0 0
        %376 = vmatprep.subr.bf16.mxu0 0
        %377 = vmatpush1.bf16.xpose.msra.mxu0 0
        %378 = vmatprep.subr.bf16.mxu0 0
        %379 = vmatpush1.bf16.xpose.msra.mxu0 0
        %380 = vmatprep.mubr.bf16.mxu0 0
        %381 = vmatmul.mubr.bf16.gmra.mrb[0].mxu0 %v346
        %v382 = vpop.f32.mrb[0].mxu0
        %v383 = vadd.f32 0.0, %v382
        %v384 = vpop.f32.mrb[0].mxu0
        %v385 = vpop.f32.mrb[0].mxu0
        %v386 = vpop.f32.mrb[0].mxu0
        %387 = vdwg.mxu0
        %v388 = vlaneseq
        %v389 = vshrl.u32 %v388, 7
        %v390 = vlaneseq
        %v391 = vand.u32 %v390, 127
        %vm392 = vcmp.le.s32.totalorder %v391, %v389
        %v393 = vsel %vm392, %v383, -3.4028235e+38
        %vm394 = vcmask 64512
        %v395 = vsel %vm394, %v393, -inf
        %396 = vmax.xlane.f32.xlu0 %v395
        %v397 = vpop.xlane.xlu0 %396
        %v398 = vsub.f32 %v393, %v397
        %v399 = vmul.f32 %v398, 1.442695
        %v400 = vpow.pop %v399
        %v401 = vsel %vm394, %v400, 0.0
        %402 = vadd.xlane.f32.xlu0 %v401
        %v403 = vpop.xlane.xlu0 %402
        %v404 = vpack.c.bf16 %v400, %v400
        %v405 = vpack.c.bf16 %v341, %v341
        %v407 = vsel %vm394, %v404, 0
        %vm409 = vcmask 1043456
        %v411 = vsel %vm409, %v405, 0
        %413 = vmatprep.subr.bf16.mxu0 0
        %414 = vmatpush1.bf16.msra.mxu0 %v411
        %415 = vmatprep.subr.bf16.mxu0 0
        %416 = vmatpush1.bf16.msra.mxu0 0
        %417 = vmatprep.subr.bf16.mxu0 0
        %418 = vmatpush1.bf16.msra.mxu0 0
        %419 = vmatprep.subr.bf16.mxu0 0
        %420 = vmatpush1.bf16.msra.mxu0 0
        %421 = vmatprep.subr.bf16.mxu0 0
        %422 = vmatpush1.bf16.msra.mxu0 0
        %423 = vmatprep.subr.bf16.mxu0 0
        %424 = vmatpush1.bf16.msra.mxu0 0
        %425 = vmatprep.subr.bf16.mxu0 0
        %426 = vmatpush1.bf16.msra.mxu0 0
        %427 = vmatprep.subr.bf16.mxu0 0
        %428 = vmatpush1.bf16.msra.mxu0 0
        %429 = vmatprep.subr.bf16.mxu0 0
        %430 = vmatpush1.bf16.msra.mxu0 0
        %431 = vmatprep.subr.bf16.mxu0 0
        %432 = vmatpush1.bf16.msra.mxu0 0
        %433 = vmatprep.subr.bf16.mxu0 0
        %434 = vmatpush1.bf16.msra.mxu0 0
        %435 = vmatprep.subr.bf16.mxu0 0
        %436 = vmatpush1.bf16.msra.mxu0 0
        %437 = vmatprep.subr.bf16.mxu0 0
        %438 = vmatpush1.bf16.msra.mxu0 0
        %439 = vmatprep.subr.bf16.mxu0 0
        %440 = vmatpush1.bf16.msra.mxu0 0
        %441 = vmatprep.subr.bf16.mxu0 0
        %442 = vmatpush1.bf16.msra.mxu0 0
        %443 = vmatprep.subr.bf16.mxu0 0
        %444 = vmatpush1.bf16.msra.mxu0 0
        %445 = vmatprep.mubr.bf16.mxu0 0
        %446 = vmatmul.mubr.bf16.gmra.mrb[0].mxu0 %v407
        %v447 = vpop.f32.mrb[0].mxu0
        %v448 = vadd.f32 0.0, %v447
        %v449 = vpop.f32.mrb[0].mxu0
        %v450 = vpop.f32.mrb[0].mxu0
        %v451 = vpop.f32.mrb[0].mxu0
        %452 = vdwg.mxu0
        %v453 = vrcp.pop %v403
        %v454 = vmul.f32 %v448, %v453
        %vm455 = vcmask 130048
        %456 = vst.msk [vmem:[%s200] sm:$0xff] %vm455, %v454
        %s457 = sand.u32 %s97, 1
        %s458 = scalar_lea.sflag [#allocation4], %s457
        %s459 = sand.u32 %s97, 1
        %s460 = smul.addr %s459, 8
        %s461 = scalar_lea.vmem [#allocation7], %s460
        // Predicated region
        $region41: #{tpu_custom_call.1} parent=31 // pred_check
          %p462 = pneg %p107
        $region42: #{tpu_custom_call.1} parent=31 // pred_check_branch
          %464 = sbr.rel (%p462) target = $region44
        $region43: #{tpu_custom_call.1} parent=31 // pred_region
          %s466 = ssub.s32 128, 128
          %467 = vsyncadd %s458, %s466
          %s468 = smul.addr %s21, 128
          %s469 = scalar_lea.hbm %s3, %s468
          %s471 = sshll.u32 %s461, 4
          %s472 = int_to_ptr.vmem [resolvable:$true] %s471
          %474 = dma.vmem_to_hbm [thread:$0]  %s472, 128, %s469, %s458
        $region44: #{tpu_custom_call.1} parent=31 // pred_fallthru
          _
      $region32: #{tpu_custom_call.1} parent=5 // pred_fallthru
        _
      %p475 = scmp.le.s32.totalorder 2, %s16
      // Predicated region
      $region45: #{tpu_custom_call.1} parent=5 // pred_check
        %p476 = pneg %p475
      $region46: #{tpu_custom_call.1} parent=5 // pred_check_branch
        %478 = sbr.rel (%p476) target = $region48
      $region47: #{tpu_custom_call.1} parent=5 // pred_region
        %s479 = ssub.s32 %s16, 2
        // Predicated region
        $region49: #{tpu_custom_call.1} parent=47 // pred_check
          %p480 = pneg %p113
        $region50: #{tpu_custom_call.1} parent=47 // pred_check_branch
          %482 = sbr.rel (%p480) target = $region52
        $region51: #{tpu_custom_call.1} parent=47 // pred_region
          %s483 = sand.u32 %s98, 1
          %s484 = scalar_lea.sflag [#allocation4], %s483
          %s485 = sand.u32 %s98, 1
          %s486 = smul.addr %s485, 8
          %s487 = scalar_lea.vmem [#allocation7], %s486
          %488 = dma.done %s484, 128
        $region52: #{tpu_custom_call.1} parent=47 // pred_fallthru
          _
      $region48: #{tpu_custom_call.1} parent=5 // pred_fallthru
        _
    $region6: #{tpu_custom_call.1} parent=1 // loop_footer
      %s20 = sadd.s32 1, %s16
    $region7: #{tpu_custom_call.1} parent=1 // loop_footer_branch
      %15 = sbr.rel target = $region3
    $region8: #{tpu_custom_call.1} parent=1 // loop_exit
      _
    %489 = vsyncpa [#allocation3], 1
    %s490 = scalar_lea.sflag [#allocation3], 1
    %491 = vsyncpa %s490, 1
    %492 = vsyncpa [#allocation6], 1
    %493 = vsyncpa [#allocation4], 1
    %s494 = scalar_lea.sflag [#allocation4], 1
    %495 = vsyncpa %s494, 1

</llo_original>
